<compile_context>
chip_gen: v7x
topology: tpu7x:2x2x1
jax: 0.10.0
libtpu: 0.0.40
codegen_flags: <defaults>
</compile_context>

<pallas_src>
import functools

import jax
import jax.numpy as jnp
from jax import lax
from jax.experimental import pallas as pl
from jax.experimental.pallas import tpu as pltpu

LANE = 128


def _round_up(x, m):
    return (x + m - 1) // m * m


# ----------------------------- Pallas kernel --------------------------------
def _make_mlp_max_kernel(num_layers, tile_s, nsample):
    """Per-point MLP (folded conv+BN+ReLU) + max over the neighbor axis.

    Kernel refs (in order):
      gx_ref : (tile_s*K, Cxp) bf16   grouped_xyz_norm slab (zero-padded to Cxp)
      gp_ref : (tile_s*K, D)   bf16   grouped point-feature slab
      Wx, Wp, b0, W1, b1, ..., W_{L-1}, b_{L-1}   (weights bf16, biases f32)
      out_ref: (tile_s, Cpad)  bf16   lane-dense output block
    """

    def kernel(gx_ref, gp_ref, *refs):
        out_ref = refs[-1]
        params = refs[:-1]

        # Layer 0: contraction split over [xyz_norm | point feats] — the
        # concat is never materialized in HBM.  f32 accumulation on the MXU.
        acc = jnp.dot(gx_ref[...], params[0][...],
                      preferred_element_type=jnp.float32)
        acc = acc + jnp.dot(gp_ref[...], params[1][...],
                            preferred_element_type=jnp.float32)
        acc = jnp.maximum(acc + params[2][...], 0.0)          # folded BN + ReLU
        h = acc.astype(jnp.bfloat16) if num_layers > 1 else acc

        # Layers 1..L-1: bf16-only intermediates (fused bias+ReLU+cast); only
        # the final layer keeps f32 alive (it feeds the neighbor max).
        for li in range(1, num_layers):
            w = params[2 * li + 1][...]
            b = params[2 * li + 2][...]
            acc = jnp.maximum(
                jnp.dot(h, w, preferred_element_type=jnp.float32) + b, 0.0)
            if li + 1 < num_layers:
                h = acc.astype(jnp.bfloat16)

        c_pad = acc.shape[-1]
        # Max-pool over the neighbor axis in-register.  K is a multiple of 8,
        # so the (tile_s, K, Cpad) f32 view lines up with sublane groups and
        # the reduction is a cheap sublane reduce.
        red = jnp.max(acc.reshape(tile_s, nsample, c_pad), axis=1)
        out_ref[...] = red.astype(out_ref.dtype)               # bf16, lane-dense

    return kernel


# --------------------------- tiling / VMEM budget ----------------------------
def _vmem_budget_and_limit():
    """(tile-selection budget, compiler vmem_limit_bytes) for this TPU gen."""
    cap = 64 * 1024 * 1024                    # conservative default (v7x per-TC)
    try:
        info = pltpu.get_tpu_info()
        c = getattr(info, "vmem_capacity_bytes", None)
        if c:
            cap = int(c)
    except Exception:
        pass
    # v5e/v6e (128 MiB): ~45 MiB tile budget.  v7x (64 MiB/TC): ~22 MiB.
    budget = min(int(cap * 0.35), 48 * 1024 * 1024)
    # Raise the scoped-VMEM limit so the compiler accepts the bigger blocks,
    # while leaving headroom for its own internal scratch.
    limit = max(32 * 1024 * 1024, min(int(cap * 0.9), 128 * 1024 * 1024))
    return budget, limit


def _param_buffer_bytes(params):
    """VMEM held by the (double-buffered, tile-padded) weight/bias blocks."""
    total = 0
    for a in params:
        r, c = a.shape
        sub = 16 if a.dtype.itemsize == 2 else 8
        total += 2 * _round_up(r, sub) * _round_up(c, LANE) * a.dtype.itemsize
    return total


def _choose_tile_s(S, K, B, in_widths, c_pad_max, c_out_pad, param_bytes,
                   vmem_budget_bytes, min_grid_steps=2, max_rows=2048):
    """Largest divisor of S whose true VMEM working set fits the budget."""

    def aligned(t):
        if t == S:
            return True
        return t % 16 == 0 and (t * K) % 16 == 0

    def vmem_bytes(t):
        rows = t * K
        # double-buffered bf16 input slabs, each lane-padded to 128
        in_b = sum(2 * rows * _round_up(w, LANE) * 2 for w in in_widths)
        out_b = 2 * t * c_out_pad * 2                 # double-buffered bf16 out
        act_b = rows * c_pad_max * (4 + 2 + 2)        # f32 acc + bf16 in/out
        return in_b + out_b + act_b + param_bytes

    divisors = sorted((d for d in range(1, S + 1) if S % d == 0), reverse=True)
    for strict in (True, False):
        for t in divisors:
            if not aligned(t) or vmem_bytes(t) > vmem_budget_bytes:
                continue
            if strict:
                if B * (S // t) < min_grid_steps:     # keep both v7x TCs busy
                    continue
                if t * K > max_rows:                  # diminishing returns >2k rows
                    continue
            return t
    return S


# ------------------------------ param folding --------------------------------
def fold_split_and_pad_params(layer_params, lane=LANE, cx=3, cx_pad=8):
    """Fold BN into the 1x1 convs, split layer-0 over [xyz_norm | feats], and
    zero-pad channels to `lane`.  Returns the flat kernel arg list:
    [Wx, Wp, b0, W1, b1, ...] (weights bf16, biases f32 shaped (1, Cpad)).

    Zero padding is safe: padded W columns / bias entries are zero and every
    layer ends in ReLU (ReLU(0)=0), so padded channels stay exactly zero and
    the zero-padded rows of the next layer ignore them.
    """
    args = []
    prev_pad = 0
    for li, (W, b, sc, sh) in enumerate(layer_params):
        ci, co = W.shape
        co_p = _round_up(co, lane)
        Wf = jnp.pad(W * sc[None, :], ((0, 0), (0, co_p - co)))   # fold BN scale
        bf = jnp.pad(b * sc + sh, (0, co_p - co))                 # fold BN shift
        if li == 0:
            Wx = jnp.pad(Wf[:cx], ((0, cx_pad - cx), (0, 0)))     # (cx_pad, c0p)
            args.append(Wx.astype(jnp.bfloat16))
            args.append(Wf[cx:].astype(jnp.bfloat16))             # (D, c0p)
        else:
            args.append(jnp.pad(Wf, ((0, prev_pad), (0, 0))).astype(jnp.bfloat16))
        args.append(bf.astype(jnp.float32).reshape(1, co_p))
        prev_pad = co_p - co
    return args


# ------------------------------- Pallas wrapper -------------------------------
def mlp_max_pallas(gxn, gpts, params, *, tile_s=None):
    """gxn: (B,S,K,3) f32, gpts: (B,S,K,D) f32, params: flat folded list.
    Returns (B, S, Cpad) bf16 (channel-padded, lane-dense)."""
    B, S, K, cx = gxn.shape
    D = int(gpts.shape[-1])
    cx_pad = int(params[0].shape[0])
    num_layers = (len(params) - 1) // 2
    c_pad_max = max(int(p.shape[-1]) for p in params)
    c_out_pad = int(params[-1].shape[-1])

    budget, vmem_limit = _vmem_budget_and_limit()
    if tile_s is None:
        tile_s = _choose_tile_s(S, K, B, (cx_pad, D), c_pad_max, c_out_pad,
                                _param_buffer_bytes(params), budget)
    assert S % tile_s == 0

    # Free, contiguous reshapes (no transpose); bf16 halves the input DMA.
    # xyz-norm channels zero-padded 3 -> cx_pad (fuses with the cast).
    gx = jnp.pad(gxn.astype(jnp.bfloat16),
                 ((0, 0), (0, 0), (0, 0), (0, cx_pad - cx))
                 ).reshape(B, S * K, cx_pad)
    gp = gpts.astype(jnp.bfloat16).reshape(B, S * K, D)

    in_specs = [
        pl.BlockSpec((None, tile_s * K, cx_pad), lambda b, s: (b, s, 0)),
        pl.BlockSpec((None, tile_s * K, D), lambda b, s: (b, s, 0)),
    ]
    # Weights/biases: constant index_map -> Pallas re-uses the block and skips
    # the copy after step 0; their double buffers are already charged to the
    # tile-selection budget above.
    for p in params:
        r, c = p.shape
        in_specs.append(pl.BlockSpec((r, c), lambda b, s: (0, 0)))

    out_spec = pl.BlockSpec((None, tile_s, c_out_pad), lambda b, s: (b, s, 0))

    return pl.pallas_call(
        _make_mlp_max_kernel(num_layers, tile_s, K),
        out_shape=jax.ShapeDtypeStruct((B, S, c_out_pad), jnp.bfloat16),
        grid_spec=pltpu.PrefetchScalarGridSpec(
            num_scalar_prefetch=0,
            grid=(B, S // tile_s),
            in_specs=in_specs,
            out_specs=out_spec,
        ),
        compiler_params=pltpu.CompilerParams(
            dimension_semantics=("parallel", "parallel"),
            vmem_limit_bytes=vmem_limit),
    )(gx, gp, *params)


# ------------------------------ JAX glue -------------------------------------
def farthest_point_sample(xyz, npoint):
    # TODO(synk): torch version starts from a random index (torch.randint);
    # we use a deterministic start index 0 for reproducibility.
    B, N, _ = xyz.shape

    def body(i, carry):
        centroids, distance, farthest = carry
        centroids = centroids.at[:, i].set(farthest)
        centroid = jnp.take_along_axis(xyz, farthest[:, None, None], axis=1)
        dist = jnp.sum((xyz - centroid) ** 2, axis=-1)
        distance = jnp.minimum(distance, dist)
        farthest = jnp.argmax(distance, axis=-1).astype(jnp.int32)
        return centroids, distance, farthest

    centroids0 = jnp.zeros((B, npoint), jnp.int32)
    distance0 = jnp.full((B, N), 1e10, jnp.float32)
    farthest0 = jnp.zeros((B,), jnp.int32)
    centroids, _, _ = lax.fori_loop(0, npoint, body,
                                    (centroids0, distance0, farthest0))
    return centroids


def index_points(points, idx):
    # points: (B, N, C), idx: (B, ...) -> (B, ..., C)
    return jax.vmap(lambda p, i: p[i])(points, idx)


def sample_and_group_knn(xyz, points, npoint, nsample):
    fps_idx = farthest_point_sample(xyz, npoint)
    new_xyz = index_points(xyz, fps_idx)                                  # (B,S,3)
    dists = jnp.sum((new_xyz[:, :, None, :] - xyz[:, None, :, :]) ** 2, -1)
    _, idx = lax.top_k(-dists, nsample)                                   # (B,S,K)
    grouped_xyz_norm = index_points(xyz, idx) - new_xyz[:, :, None, :]    # (B,S,K,3)
    grouped_points = index_points(points, idx)                            # (B,S,K,D)
    # No jnp.concatenate here: the two slabs go to the kernel separately.
    return new_xyz, grouped_xyz_norm, grouped_points


@functools.partial(jax.jit, static_argnames=("k", "nneighbor"))
def transition_down_forward(xyz, points, layer_params, k, nneighbor):
    new_xyz, gxn, gpts = sample_and_group_knn(xyz, points, k, nneighbor)
    params = fold_split_and_pad_params(layer_params)
    out_padded = mlp_max_pallas(gxn, gpts, params)          # (B, S, Cpad) bf16
    c_out = layer_params[-1][0].shape[1]
    # Keep the module's (B, S, C_out) contract; consumers that tolerate the
    # channel-padded layout should use `out_padded` directly to skip this pass.
    if c_out == out_padded.shape[-1]:
        return new_xyz, out_padded
    return new_xyz, out_padded[..., :c_out]


def reference_forward(xyz, points, layer_params, k, nneighbor):
    # Same numerics as the kernel path: folded BN, bf16 weights/activations,
    # f32 accumulation, f32 max over neighbors, bf16 result.
    _, gxn, gpts = sample_and_group_knn(xyz, points, k, nneighbor)
    h = jnp.concatenate([gxn, gpts], -1).astype(jnp.bfloat16)   # (B,S,K,Cin)
    acc = None
    for (W, b, sc, sh) in layer_params:
        Wf = (W * sc[None, :]).astype(jnp.bfloat16)
        bf = (b * sc + sh).astype(jnp.float32)
        acc = jnp.einsum("bskc,cd->bskd", h, Wf,
                         preferred_element_type=jnp.float32)
        acc = jnp.maximum(acc + bf, 0.0)
        h = acc.astype(jnp.bfloat16)
    return jnp.max(acc, axis=2).astype(jnp.bfloat16)            # (B,S,C_out)


def init_params(key, channels):
    params = []
    last = channels[0]
    eps = 1e-5
    for co in channels[1:]:
        k1, k2, k3, k4, k5, k6, key = jax.random.split(key, 7)
        W = jax.random.normal(k1, (last, co), jnp.float32) / jnp.sqrt(float(last))
        b = 0.1 * jax.random.normal(k2, (co,), jnp.float32)
        gamma = 1.0 + 0.1 * jax.random.normal(k3, (co,), jnp.float32)
        beta = 0.1 * jax.random.normal(k4, (co,), jnp.float32)
        mean = 0.1 * jax.random.normal(k5, (co,), jnp.float32)
        var = jnp.abs(jax.random.normal(k6, (co,), jnp.float32)) + 0.5
        scale = gamma / jnp.sqrt(var + eps)
        shift = beta - mean * scale
        params.append((W, b, scale, shift))
        last = co
    return params


if __name__ == "__main__":
    key = jax.random.PRNGKey(0)
    B, N = 2, 64                    # batch, input points
    k_centroids, nneighbor = 16, 8  # S (FPS centroids), K (kNN neighbors)
    channels = [16, 32, 64]         # in_channel = 3 + D  =>  D = 13
    D = channels[0] - 3

    kx, kp, kw = jax.random.split(key, 3)
    xyz = jax.random.normal(kx, (B, N, 3), jnp.float32)
    points = jax.random.normal(kp, (B, N, D), jnp.float32)
    layer_params = init_params(kw, channels)

    new_xyz, out = transition_down_forward(xyz, points, layer_params,
                                           k_centroids, nneighbor)
    jax.block_until_ready((new_xyz, out))

    ref = reference_forward(xyz, points, layer_params, k_centroids, nneighbor)
    assert new_xyz.shape == (B, k_centroids, 3)
    assert out.shape == (B, k_centroids, channels[-1])
    assert jnp.allclose(out.astype(jnp.float32), ref.astype(jnp.float32),
                        atol=2e-2, rtol=2e-2)
    print("KERNEL_OK")
</pallas_src>

<mosaic_0001>
module attributes {stable_mosaic.version = 11 : i64} {
  func.func @kernel(%arg0: i32, %arg1: i32, %arg2: memref<1x128x8xbf16, #tpu.memory_space<vmem>>, %arg3: memref<1x128x13xbf16, #tpu.memory_space<vmem>>, %arg4: memref<8x128xbf16, #tpu.memory_space<vmem>>, %arg5: memref<13x128xbf16, #tpu.memory_space<vmem>>, %arg6: memref<1x128xf32, #tpu.memory_space<vmem>>, %arg7: memref<128x128xbf16, #tpu.memory_space<vmem>>, %arg8: memref<1x128xf32, #tpu.memory_space<vmem>>, %arg9: memref<1x16x128xbf16, #tpu.memory_space<vmem>>) attributes {dimension_semantics = [#tpu.dimension_semantics<parallel>, #tpu.dimension_semantics<parallel>], iteration_bounds = array<i64: 2, 1>, scalar_prefetch = 0 : i64, scratch_operands = 0 : i64, tpu.core_type = #tpu.core_type<tc>, window_params = [{transform_indices = @transform_0, window_bounds = array<i64: 1, 128, 8>}, {transform_indices = @transform_1, window_bounds = array<i64: 1, 128, 13>}, {pipeline_mode = #tpu.pipeline_mode<synchronous>, transform_indices = @transform_2, window_bounds = array<i64: 8, 128>}, {pipeline_mode = #tpu.pipeline_mode<synchronous>, transform_indices = @transform_3, window_bounds = array<i64: 13, 128>}, {pipeline_mode = #tpu.pipeline_mode<synchronous>, transform_indices = @transform_4, window_bounds = array<i64: 1, 128>}, {pipeline_mode = #tpu.pipeline_mode<synchronous>, transform_indices = @transform_5, window_bounds = array<i64: 128, 128>}, {pipeline_mode = #tpu.pipeline_mode<synchronous>, transform_indices = @transform_6, window_bounds = array<i64: 1, 128>}, {transform_indices = @transform_7, window_bounds = array<i64: 1, 16, 128>}]} {
    %c0 = arith.constant 0 : index
    %c0_0 = arith.constant 0 : index
    %c0_1 = arith.constant 0 : index
    %0 = vector.load %arg2[%c0, %c0_0, %c0_1] : memref<1x128x8xbf16, #tpu.memory_space<vmem>>, vector<1x128x8xbf16>
    %1 = vector.shape_cast %0 : vector<1x128x8xbf16> to vector<128x8xbf16>
    %c0_2 = arith.constant 0 : index
    %c0_3 = arith.constant 0 : index
    %2 = vector.load %arg4[%c0_2, %c0_3] : memref<8x128xbf16, #tpu.memory_space<vmem>>, vector<8x128xbf16>
    %cst = arith.constant dense<0.000000e+00> : vector<128x128xf32>
    %3 = tpu.matmul %1, %2, %cst {dimension_numbers = #tpu.dot_dimension_numbers<[1], [0], [0], [1], [0, 0, 1, 1], [], []>} : vector<128x8xbf16>, vector<8x128xbf16>, vector<128x128xf32> -> vector<128x128xf32>
    %c0_4 = arith.constant 0 : index
    %c0_5 = arith.constant 0 : index
    %c0_6 = arith.constant 0 : index
    %4 = vector.load %arg3[%c0_4, %c0_5, %c0_6] : memref<1x128x13xbf16, #tpu.memory_space<vmem>>, vector<1x128x13xbf16>
    %5 = vector.shape_cast %4 : vector<1x128x13xbf16> to vector<128x13xbf16>
    %c0_7 = arith.constant 0 : index
    %c0_8 = arith.constant 0 : index
    %6 = vector.load %arg5[%c0_7, %c0_8] : memref<13x128xbf16, #tpu.memory_space<vmem>>, vector<13x128xbf16>
    %cst_9 = arith.constant dense<0.000000e+00> : vector<128x128xf32>
    %7 = tpu.matmul %5, %6, %cst_9 {dimension_numbers = #tpu.dot_dimension_numbers<[1], [0], [0], [1], [0, 0, 1, 1], [], []>} : vector<128x13xbf16>, vector<13x128xbf16>, vector<128x128xf32> -> vector<128x128xf32>
    %8 = arith.addf %3, %7 : vector<128x128xf32>
    %c0_10 = arith.constant 0 : index
    %c0_11 = arith.constant 0 : index
    %9 = vector.load %arg6[%c0_10, %c0_11] : memref<1x128xf32, #tpu.memory_space<vmem>>, vector<1x128xf32>
    %10 = vector.broadcast %9 : vector<1x128xf32> to vector<128x128xf32>
    %11 = arith.addf %8, %10 : vector<128x128xf32>
    %cst_12 = arith.constant 0.000000e+00 : f32
    %12 = vector.broadcast %cst_12 : f32 to vector<128x128xf32>
    %13 = arith.maximumf %11, %12 : vector<128x128xf32>
    %14 = arith.truncf %13 : vector<128x128xf32> to vector<128x128xbf16>
    %c0_13 = arith.constant 0 : index
    %c0_14 = arith.constant 0 : index
    %15 = vector.load %arg7[%c0_13, %c0_14] : memref<128x128xbf16, #tpu.memory_space<vmem>>, vector<128x128xbf16>
    %c0_15 = arith.constant 0 : index
    %c0_16 = arith.constant 0 : index
    %16 = vector.load %arg8[%c0_15, %c0_16] : memref<1x128xf32, #tpu.memory_space<vmem>>, vector<1x128xf32>
    %cst_17 = arith.constant dense<0.000000e+00> : vector<128x128xf32>
    %17 = tpu.matmul %14, %15, %cst_17 {dimension_numbers = #tpu.dot_dimension_numbers<[1], [0], [0], [1], [0, 0, 1, 1], [], []>} : vector<128x128xbf16>, vector<128x128xbf16>, vector<128x128xf32> -> vector<128x128xf32>
    %18 = vector.broadcast %16 : vector<1x128xf32> to vector<128x128xf32>
    %19 = arith.addf %17, %18 : vector<128x128xf32>
    %cst_18 = arith.constant 0.000000e+00 : f32
    %20 = vector.broadcast %cst_18 : f32 to vector<128x128xf32>
    %21 = arith.maximumf %19, %20 : vector<128x128xf32>
    %22 = vector.shape_cast %21 : vector<128x128xf32> to vector<16x8x128xf32>
    %cst_19 = arith.constant dense<0xFF800000> : vector<16x128xf32>
    %23 = vector.multi_reduction <maximumf>, %22, %cst_19 [1] : vector<16x8x128xf32> to vector<16x128xf32>
    %24 = arith.truncf %23 : vector<16x128xf32> to vector<16x128xbf16>
    %c0_20 = arith.constant 0 : index
    %c0_21 = arith.constant 0 : index
    %c0_22 = arith.constant 0 : index
    %25 = vector.load %arg9[%c0_20, %c0_21, %c0_22] : memref<1x16x128xbf16, #tpu.memory_space<vmem>>, vector<1x16x128xbf16>
    %26 = vector.shape_cast %25 : vector<1x16x128xbf16> to vector<16x128xbf16>
    %27 = vector.shape_cast %24 : vector<16x128xbf16> to vector<1x16x128xbf16>
    tpu.vector_store %arg9[%c0_20, %c0_21, %c0_22], %27 {strides = array<i32>} : memref<1x16x128xbf16, #tpu.memory_space<vmem>>, vector<1x16x128xbf16>,
    return
  }
  func.func @transform_0(%arg0: i32, %arg1: i32) -> (i32, i32, i32) {
    %c0_i32 = arith.constant 0 : i32
    %c0_i32_0 = arith.constant 0 : i32
    return %arg0, %arg1, %c0_i32 : i32, i32, i32
  }
  func.func @transform_1(%arg0: i32, %arg1: i32) -> (i32, i32, i32) {
    %c0_i32 = arith.constant 0 : i32
    %c0_i32_0 = arith.constant 0 : i32
    return %arg0, %arg1, %c0_i32 : i32, i32, i32
  }
  func.func @transform_2(%arg0: i32, %arg1: i32) -> (i32, i32) {
    %c0_i32 = arith.constant 0 : i32
    %c0_i32_0 = arith.constant 0 : i32
    %c0_i32_1 = arith.constant 0 : i32
    return %c0_i32, %c0_i32_0 : i32, i32
  }
  func.func @transform_3(%arg0: i32, %arg1: i32) -> (i32, i32) {
    %c0_i32 = arith.constant 0 : i32
    %c0_i32_0 = arith.constant 0 : i32
    %c0_i32_1 = arith.constant 0 : i32
    return %c0_i32, %c0_i32_0 : i32, i32
  }
  func.func @transform_4(%arg0: i32, %arg1: i32) -> (i32, i32) {
    %c0_i32 = arith.constant 0 : i32
    %c0_i32_0 = arith.constant 0 : i32
    %c0_i32_1 = arith.constant 0 : i32
    return %c0_i32, %c0_i32_0 : i32, i32
  }
  func.func @transform_5(%arg0: i32, %arg1: i32) -> (i32, i32) {
    %c0_i32 = arith.constant 0 : i32
    %c0_i32_0 = arith.constant 0 : i32
    %c0_i32_1 = arith.constant 0 : i32
    return %c0_i32, %c0_i32_0 : i32, i32
  }
  func.func @transform_6(%arg0: i32, %arg1: i32) -> (i32, i32) {
    %c0_i32 = arith.constant 0 : i32
    %c0_i32_0 = arith.constant 0 : i32
    %c0_i32_1 = arith.constant 0 : i32
    return %c0_i32, %c0_i32_0 : i32, i32
  }
  func.func @transform_7(%arg0: i32, %arg1: i32) -> (i32, i32, i32) {
    %c0_i32 = arith.constant 0 : i32
    %c0_i32_0 = arith.constant 0 : i32
    return %arg0, %arg1, %c0_i32 : i32, i32, i32
  }
}

</mosaic_0001>

<llo_original>
// kernel: custom-call.8
$region0: #{custom-call.8}
  %s0 = inlined_call_operand.vmem [shape: f32[2,64], index: 0, kind: output, shape index: {}]

// kernel: neg.1
$region0: #{neg.1}
  #allocation0 [shape = 's32[1]{0}', space=sflag, size = 0x4, scoped, tag = 'scoped memory for neg.1']
  %s0 = inlined_call_operand.vmem [shape: f32[2,16,64], index: 0, kind: input, shape index: {}]
  %s1 = inlined_call_operand.vmem [shape: f32[2,16,64], index: 1, kind: output, shape index: {}]
  %v2 = vld [vmem:[%s0] sm:$0xff]
  %3 = xla_tuple %v2
  %4 = xla_tuple %3
  %v5 = vxor.u32 %v2, 2147483648
  %6 = xla_tuple %v5
  %7 = vst [vmem:[%s1] sm:$0xff] %v5
  %s8 = scalar_lea.vmem %s0, 16
  %v9 = vld [vmem:[%s8] sm:$0xff]
  %10 = xla_tuple %v9
  %11 = xla_tuple %10
  %v12 = vxor.u32 %v9, 2147483648
  %13 = xla_tuple %v12
  %s14 = scalar_lea.vmem %s1, 16
  %15 = vst [vmem:[%s14] sm:$0xff] %v12
  %s16 = scalar_lea.vmem %s0, 8
  %v17 = vld [vmem:[%s16] sm:$0xff]
  %18 = xla_tuple %v17
  %19 = xla_tuple %18
  %v20 = vxor.u32 %v17, 2147483648
  %21 = xla_tuple %v20
  %s22 = scalar_lea.vmem %s1, 8
  %23 = vst [vmem:[%s22] sm:$0xff] %v20
  %s24 = scalar_lea.vmem %s0, 24
  %v25 = vld [vmem:[%s24] sm:$0xff]
  %26 = xla_tuple %v25
  %27 = xla_tuple %26
  %v28 = vxor.u32 %v25, 2147483648
  %29 = xla_tuple %v28
  %s30 = scalar_lea.vmem %s1, 24
  %31 = vst [vmem:[%s30] sm:$0xff] %v28

// kernel: transition_down_forward.1
$region0: #{transition_down_forward.1}
  #allocation0 [shape = 'u32[]', space=smem, size = 0x4, offset = 0x4, fixed_abs, tag = 'smem constant byte address 0x4 - core index']
  #allocation1 [shape = 'u32[144,128]{1,0:T(1,128)}', space=vmem, size = 0x12000, scoped, tag = 'internal scratch']
  %s0 = inlined_call_operand.vmem [shape: bf16[2,128,8], index: 0, kind: input, shape index: {}]
  %s1 = inlined_call_operand.vmem [shape: bf16[2,128,13], index: 1, kind: input, shape index: {}]
  %s2 = inlined_call_operand.vmem [shape: bf16[8,128], index: 2, kind: input, shape index: {}]
  %s3 = inlined_call_operand.vmem [shape: bf16[13,128], index: 3, kind: input, shape index: {}]
  %s4 = inlined_call_operand.vmem [shape: f32[1,128], index: 4, kind: input, shape index: {}]
  %s5 = inlined_call_operand.vmem [shape: bf16[128,128], index: 5, kind: input, shape index: {}]
  %s6 = inlined_call_operand.vmem [shape: f32[1,128], index: 6, kind: input, shape index: {}]
  %s7 = inlined_call_operand.hbm [shape: bf16[2,16,128], index: 7, kind: output, shape index: {}]
  %s8 = sld [smem:[#allocation0]]
  $region61: #{transition_down_forward.1} parent=0
    _
  %s10 = ssub.s32 1, %s8
  %s11 = scalar_select 0, %s10, %s8
  $region1: #{transition_down_forward.1} parent=0
    #allocation2 [shape = 'u8[8192]{0}', space=vmem, size = 0x2000, scoped, tag = 'output window, operand 0']
    #allocation3 [shape = 's32[2]{0}', space=sflag, size = 0x8, scoped, tag = 'scoped memory for transition_down_forward.1']
    %12 = vsyncpa [#allocation3], 0
    %s13 = scalar_lea.sflag [#allocation3], 1
    %14 = vsyncpa %s13, 0
    loop: start=0, step=1, limit=4
    $region2: #{transition_down_forward.1} parent=1 // loop_pre_header
      _
    $region3: #{transition_down_forward.1} parent=1 // loop_header
      %s16 = sphi 0, %s20
      %p17 = scmp.ge.s32.totalorder %s16, 4
      %s23 = sphi 0, %s35
      %s24 = sphi 0, %s31
      %s25 = sphi 0, %s23
      %s26 = sphi 0, %s24
      %s27 = sphi 0, %s25
      %s28 = sphi 0, %s26
      %s40 = sphi 0, %s42
      %s43 = sphi 0, %s40
      %s44 = sphi 0, %s43
      %s60 = sphi 0, %s44
      %s68 = sphi 0, %s70
      %s71 = sphi 0, %s68
      %s72 = sphi 0, %s71
      %s88 = sphi 0, %s72
      %s92 = sphi 0, %s92
      %s94 = sphi 0, %s92
      %s95 = sphi 0, %s94
      %s109 = sphi 0, %s95
      %s113 = sphi 0, %s113
      %s115 = sphi 0, %s113
      %s116 = sphi 0, %s115
      %s130 = sphi 0, %s116
      %s134 = sphi 0, %s134
      %s136 = sphi 0, %s134
      %s137 = sphi 0, %s136
      %s151 = sphi 0, %s137
      %s155 = sphi 0, %s155
      %s157 = sphi 0, %s155
      %s158 = sphi 0, %s157
      %s172 = sphi 0, %s158
      %s176 = sphi 0, %s176
      %s178 = sphi 0, %s176
      %s179 = sphi 0, %s178
      %s193 = sphi 0, %s179
      %s201 = sphi 0, %s203
      %s204 = sphi 0, %s201
      %s205 = sphi 0, %s204
      %s221 = sphi 0, %s205
    $region4: #{transition_down_forward.1} parent=1 // loop_header_branch
      %19 = sbr.rel (%p17) target = $region8
    $region5: #{transition_down_forward.1} parent=1 // loop_body
      %s21 = ssub.s32 %s16, 1
      %s22 = ssub.s32 %s16, 2
      %s29 = sadd.s32 1, %s24
      %p30 = scmp.ge.s32.totalorder %s29, 1
      %s31 = scalar_select %p30, 0, %s29
      %s32 = sadd.s32 1, %s23
      %s33 = scalar_select %p30, %s32, %s23
      %p34 = scmp.ge.s32.totalorder %s33, 2
      %s35 = scalar_select %p34, 0, %s33
      %s36 = ssub.s32 %s23, %s35
      %s37 = ssub.s32 %s24, %s31
      %s38 = sor.u32 %s36, %s37
      %p39 = scmp.eq.s32.totalorder %s38, 0
      %s41 = sadd.s32 %s40, 1
      %s42 = scalar_select %p39, %s40, %s41
      %p45 = pneg %p39
      %p46 = scmp.eq.s32.totalorder %s16, 1
      %p47 = por %p45, %p46
      %p48 = scmp.ne.s32.totalorder %s40, %s43
      %p49 = scmp.eq.s32.totalorder %s16, 0
      %p50 = por %p48, %p49
      %p51 = scmp.ne.s32.totalorder %s40, %s43
      %p52 = scmp.eq.s32.totalorder %s21, 1
      %p53 = por %p51, %p52
      %p54 = scmp.ne.s32.totalorder %s43, %s44
      %p55 = scmp.eq.s32.totalorder %s21, 0
      %p56 = por %p54, %p55
      %p57 = scmp.ne.s32.totalorder %s43, %s44
      %p58 = scmp.eq.s32.totalorder %s22, 1
      %p59 = por %p57, %p58
      %p61 = scmp.ne.s32.totalorder %s44, %s60
      %p62 = scmp.eq.s32.totalorder %s22, 0
      %p63 = por %p61, %p62
      %s64 = ssub.s32 %s23, %s35
      %s65 = ssub.s32 %s24, %s31
      %s66 = sor.u32 %s64, %s65
      %p67 = scmp.eq.s32.totalorder %s66, 0
      %s69 = sadd.s32 %s68, 1
      %s70 = scalar_select %p67, %s68, %s69
      %p73 = pneg %p67
      %p74 = scmp.eq.s32.totalorder %s16, 1
      %p75 = por %p73, %p74
      %p76 = scmp.ne.s32.totalorder %s68, %s71
      %p77 = scmp.eq.s32.totalorder %s16, 0
      %p78 = por %p76, %p77
      %p79 = scmp.ne.s32.totalorder %s68, %s71
      %p80 = scmp.eq.s32.totalorder %s21, 1
      %p81 = por %p79, %p80
      %p82 = scmp.ne.s32.totalorder %s71, %s72
      %p83 = scmp.eq.s32.totalorder %s21, 0
      %p84 = por %p82, %p83
      %p85 = scmp.ne.s32.totalorder %s71, %s72
      %p86 = scmp.eq.s32.totalorder %s22, 1
      %p87 = por %p85, %p86
      %p89 = scmp.ne.s32.totalorder %s72, %s88
      %p90 = scmp.eq.s32.totalorder %s22, 0
      %p91 = por %p89, %p90
      %s93 = sadd.s32 %s92, 1
      %p96 = scmp.eq.s32.totalorder %s16, 1
      %p97 = scmp.ne.s32.totalorder %s92, %s94
      %p98 = scmp.eq.s32.totalorder %s16, 0
      %p99 = por %p97, %p98
      %p100 = scmp.ne.s32.totalorder %s92, %s94
      %p101 = scmp.eq.s32.totalorder %s21, 1
      %p102 = por %p100, %p101
      %p103 = scmp.ne.s32.totalorder %s94, %s95
      %p104 = scmp.eq.s32.totalorder %s21, 0
      %p105 = por %p103, %p104
      %p106 = scmp.ne.s32.totalorder %s94, %s95
      %p107 = scmp.eq.s32.totalorder %s22, 1
      %p108 = por %p106, %p107
      %p110 = scmp.ne.s32.totalorder %s95, %s109
      %p111 = scmp.eq.s32.totalorder %s22, 0
      %p112 = por %p110, %p111
      %s114 = sadd.s32 %s113, 1
      %p117 = scmp.eq.s32.totalorder %s16, 1
      %p118 = scmp.ne.s32.totalorder %s113, %s115
      %p119 = scmp.eq.s32.totalorder %s16, 0
      %p120 = por %p118, %p119
      %p121 = scmp.ne.s32.totalorder %s113, %s115
      %p122 = scmp.eq.s32.totalorder %s21, 1
      %p123 = por %p121, %p122
      %p124 = scmp.ne.s32.totalorder %s115, %s116
      %p125 = scmp.eq.s32.totalorder %s21, 0
      %p126 = por %p124, %p125
      %p127 = scmp.ne.s32.totalorder %s115, %s116
      %p128 = scmp.eq.s32.totalorder %s22, 1
      %p129 = por %p127, %p128
      %p131 = scmp.ne.s32.totalorder %s116, %s130
      %p132 = scmp.eq.s32.totalorder %s22, 0
      %p133 = por %p131, %p132
      %s135 = sadd.s32 %s134, 1
      %p138 = scmp.eq.s32.totalorder %s16, 1
      %p139 = scmp.ne.s32.totalorder %s134, %s136
      %p140 = scmp.eq.s32.totalorder %s16, 0
      %p141 = por %p139, %p140
      %p142 = scmp.ne.s32.totalorder %s134, %s136
      %p143 = scmp.eq.s32.totalorder %s21, 1
      %p144 = por %p142, %p143
      %p145 = scmp.ne.s32.totalorder %s136, %s137
      %p146 = scmp.eq.s32.totalorder %s21, 0
      %p147 = por %p145, %p146
      %p148 = scmp.ne.s32.totalorder %s136, %s137
      %p149 = scmp.eq.s32.totalorder %s22, 1
      %p150 = por %p148, %p149
      %p152 = scmp.ne.s32.totalorder %s137, %s151
      %p153 = scmp.eq.s32.totalorder %s22, 0
      %p154 = por %p152, %p153
      %s156 = sadd.s32 %s155, 1
      %p159 = scmp.eq.s32.totalorder %s16, 1
      %p160 = scmp.ne.s32.totalorder %s155, %s157
      %p161 = scmp.eq.s32.totalorder %s16, 0
      %p162 = por %p160, %p161
      %p163 = scmp.ne.s32.totalorder %s155, %s157
      %p164 = scmp.eq.s32.totalorder %s21, 1
      %p165 = por %p163, %p164
      %p166 = scmp.ne.s32.totalorder %s157, %s158
      %p167 = scmp.eq.s32.totalorder %s21, 0
      %p168 = por %p166, %p167
      %p169 = scmp.ne.s32.totalorder %s157, %s158
      %p170 = scmp.eq.s32.totalorder %s22, 1
      %p171 = por %p169, %p170
      %p173 = scmp.ne.s32.totalorder %s158, %s172
      %p174 = scmp.eq.s32.totalorder %s22, 0
      %p175 = por %p173, %p174
      %s177 = sadd.s32 %s176, 1
      %p180 = scmp.eq.s32.totalorder %s16, 1
      %p181 = scmp.ne.s32.totalorder %s176, %s178
      %p182 = scmp.eq.s32.totalorder %s16, 0
      %p183 = por %p181, %p182
      %p184 = scmp.ne.s32.totalorder %s176, %s178
      %p185 = scmp.eq.s32.totalorder %s21, 1
      %p186 = por %p184, %p185
      %p187 = scmp.ne.s32.totalorder %s178, %s179
      %p188 = scmp.eq.s32.totalorder %s21, 0
      %p189 = por %p187, %p188
      %p190 = scmp.ne.s32.totalorder %s178, %s179
      %p191 = scmp.eq.s32.totalorder %s22, 1
      %p192 = por %p190, %p191
      %p194 = scmp.ne.s32.totalorder %s179, %s193
      %p195 = scmp.eq.s32.totalorder %s22, 0
      %p196 = por %p194, %p195
      %s197 = ssub.s32 %s23, %s35
      %s198 = ssub.s32 %s24, %s31
      %s199 = sor.u32 %s197, %s198
      %p200 = scmp.eq.s32.totalorder %s199, 0
      %s202 = sadd.s32 %s201, 1
      %s203 = scalar_select %p200, %s201, %s202
      %p206 = pneg %p200
      %p207 = scmp.eq.s32.totalorder %s16, 1
      %p208 = por %p206, %p207
      %p209 = scmp.ne.s32.totalorder %s201, %s204
      %p210 = scmp.eq.s32.totalorder %s16, 0
      %p211 = por %p209, %p210
      %p212 = scmp.ne.s32.totalorder %s201, %s204
      %p213 = scmp.eq.s32.totalorder %s21, 1
      %p214 = por %p212, %p213
      %p215 = scmp.ne.s32.totalorder %s204, %s205
      %p216 = scmp.eq.s32.totalorder %s21, 0
      %p217 = por %p215, %p216
      %p218 = scmp.ne.s32.totalorder %s204, %s205
      %p219 = scmp.eq.s32.totalorder %s22, 1
      %p220 = por %p218, %p219
      %p222 = scmp.ne.s32.totalorder %s205, %s221
      %p223 = scmp.eq.s32.totalorder %s22, 0
      %p224 = por %p222, %p223
      %p225 = scmp.le.s32.totalorder 1, %s16
      %p226 = scmp.lt.s32.totalorder %s16, 3
      %p227 = pnand %p225, %p226
      %p228 = pneg %p227
      // Predicated region
      $region9: #{transition_down_forward.1} parent=5 // pred_check
        _
      $region10: #{transition_down_forward.1} parent=5 // pred_check_branch
        %230 = sbr.rel (%p227) target = $region12
      $region11: #{transition_down_forward.1} parent=5 // pred_region
        %s231 = ssub.s32 %s16, 1
        // Predicated region
        $region13: #{transition_down_forward.1} parent=11 // pred_check
          %p232 = pneg %p105
        $region14: #{transition_down_forward.1} parent=11 // pred_check_branch
          %234 = sbr.rel (%p232) target = $region16
        $region15: #{transition_down_forward.1} parent=11 // pred_region
          _
        $region16: #{transition_down_forward.1} parent=11 // pred_fallthru
          _
        // Predicated region
        $region17: #{transition_down_forward.1} parent=11 // pred_check
          %p235 = pneg %p126
        $region18: #{transition_down_forward.1} parent=11 // pred_check_branch
          %237 = sbr.rel (%p235) target = $region20
        $region19: #{transition_down_forward.1} parent=11 // pred_region
          _
        $region20: #{transition_down_forward.1} parent=11 // pred_fallthru
          _
        // Predicated region
        $region21: #{transition_down_forward.1} parent=11 // pred_check
          %p238 = pneg %p147
        $region22: #{transition_down_forward.1} parent=11 // pred_check_branch
          %240 = sbr.rel (%p238) target = $region24
        $region23: #{transition_down_forward.1} parent=11 // pred_region
          _
        $region24: #{transition_down_forward.1} parent=11 // pred_fallthru
          _
        // Predicated region
        $region25: #{transition_down_forward.1} parent=11 // pred_check
          %p241 = pneg %p168
        $region26: #{transition_down_forward.1} parent=11 // pred_check_branch
          %243 = sbr.rel (%p241) target = $region28
        $region27: #{transition_down_forward.1} parent=11 // pred_region
          _
        $region28: #{transition_down_forward.1} parent=11 // pred_fallthru
          _
        // Predicated region
        $region29: #{transition_down_forward.1} parent=11 // pred_check
          %p244 = pneg %p189
        $region30: #{transition_down_forward.1} parent=11 // pred_check_branch
          %246 = sbr.rel (%p244) target = $region32
        $region31: #{transition_down_forward.1} parent=11 // pred_region
          _
        $region32: #{transition_down_forward.1} parent=11 // pred_fallthru
          _
      $region12: #{transition_down_forward.1} parent=5 // pred_fallthru
        _
      %p247 = scmp.lt.s32.totalorder %s16, 2
      // Predicated region
      $region33: #{transition_down_forward.1} parent=5 // pred_check
        %p248 = pneg %p247
      $region34: #{transition_down_forward.1} parent=5 // pred_check_branch
        %250 = sbr.rel (%p248) target = $region36
      $region35: #{transition_down_forward.1} parent=5 // pred_region
        // Predicated region
        $region37: #{transition_down_forward.1} parent=35 // pred_check
          %p251 = pneg %p50
        $region38: #{transition_down_forward.1} parent=35 // pred_check_branch
          %253 = sbr.rel (%p251) target = $region40
        $region39: #{transition_down_forward.1} parent=35 // pred_region
          %s254 = smul.u32 16, %s24
          %p255 = scmp.lt.s32.totalorder %s23, 1
          %s256 = scalar_select %p255, %s23, 1
          %p257 = scmp.lt.s32.totalorder %s254, 15
          %s258 = scalar_select %p257, %s254, 15
          %s259 = smul.addr %s256, 16
          %s260 = sadd.s32 %s258, %s259
          %s261 = smul.addr %s260, 4
          %s262 = scalar_lea.vmem %s0, %s261
          %s263 = smul.u32 16, %s24
        $region40: #{transition_down_forward.1} parent=35 // pred_fallthru
          _
        // Predicated region
        $region41: #{transition_down_forward.1} parent=35 // pred_check
          %p264 = pneg %p78
        $region42: #{transition_down_forward.1} parent=35 // pred_check_branch
          %266 = sbr.rel (%p264) target = $region44
        $region43: #{transition_down_forward.1} parent=35 // pred_region
          %s267 = smul.u32 16, %s24
          %p268 = scmp.lt.s32.totalorder %s23, 1
          %s269 = scalar_select %p268, %s23, 1
          %p270 = scmp.lt.s32.totalorder %s267, 15
          %s271 = scalar_select %p270, %s267, 15
          %s272 = smul.addr %s269, 16
          %s273 = sadd.s32 %s271, %s272
          %s274 = smul.addr %s273, 4
          %s275 = scalar_lea.vmem %s1, %s274
          %s276 = smul.u32 16, %s24
        $region44: #{transition_down_forward.1} parent=35 // pred_fallthru
          _
      $region36: #{transition_down_forward.1} parent=5 // pred_fallthru
        _
      %p277 = scmp.le.s32.totalorder 1, %s16
      %p278 = scmp.lt.s32.totalorder %s16, 3
      %p279 = pnand %p277, %p278
      %p280 = pneg %p279
      // Predicated region
      $region45: #{transition_down_forward.1} parent=5 // pred_check
        _
      $region46: #{transition_down_forward.1} parent=5 // pred_check_branch
        %282 = sbr.rel (%p279) target = $region48
      $region47: #{transition_down_forward.1} parent=5 // pred_region
        %s283 = ssub.s32 %s16, 1
        %s284 = smul.u32 16, %s26
        %p285 = scmp.lt.s32.totalorder %s25, 1
        %s286 = scalar_select %p285, %s25, 1
        %p287 = scmp.lt.s32.totalorder %s284, 15
        %s288 = scalar_select %p287, %s284, 15
        %s289 = smul.addr %s286, 16
        %s290 = sadd.s32 %s288, %s289
        %s291 = smul.addr %s290, 4
        %s292 = scalar_lea.vmem %s0, %s291
        %p293 = pneg %p56
        %p294 = pneg %p53
        %s295 = smul.u32 16, %s26
        %p296 = scmp.lt.s32.totalorder %s25, 1
        %s297 = scalar_select %p296, %s25, 1
        %p298 = scmp.lt.s32.totalorder %s295, 15
        %s299 = scalar_select %p298, %s295, 15
        %s300 = smul.addr %s297, 16
        %s301 = sadd.s32 %s299, %s300
        %s302 = smul.addr %s301, 4
        %s303 = scalar_lea.vmem %s1, %s302
        %p304 = pneg %p84
        %p305 = pneg %p81
        %p306 = pneg %p105
        %p307 = pneg %p102
        %p308 = pneg %p126
        %p309 = pneg %p123
        %p310 = pneg %p147
        %p311 = pneg %p144
        %p312 = pneg %p168
        %p313 = pneg %p165
        %p314 = pneg %p189
        %p315 = pneg %p186
        %p316 = pneg %p217
        %p317 = pneg %p214
        %s318 = sand.u32 %s204, 1
        %s319 = scalar_lea.sflag [#allocation3], %s318
        %s320 = sand.u32 %s204, 1
        %s321 = smul.addr %s320, 8
        %s322 = scalar_lea.vmem [#allocation2], %s321
        %s323 = smul.u32 16, %s26
        %p324 = scmp.lt.s32.totalorder %s25, 1
        %s325 = scalar_select %p324, %s25, 1
        %p326 = scmp.lt.s32.totalorder %s323, 15
        %s327 = scalar_select %p326, %s323, 15
        %s328 = smul.addr %s325, 16
        %s329 = sadd.s32 %s327, %s328
        %s330 = smul.addr %s329, 4
        %s331 = scalar_lea.vmem %s0, %s330
        %s332 = smul.u32 16, %s26
        %s333 = smul.u32 16, %s26
        %p334 = scmp.lt.s32.totalorder %s25, 1
        %s335 = scalar_select %p334, %s25, 1
        %p336 = scmp.lt.s32.totalorder %s333, 15
        %s337 = scalar_select %p336, %s333, 15
        %s338 = smul.addr %s335, 16
        %s339 = sadd.s32 %s337, %s338
        %s340 = smul.addr %s339, 4
        %s341 = scalar_lea.vmem %s1, %s340
        %s342 = smul.u32 16, %s26
        %s343 = smul.u32 2, %s26
        %v345 = vld [vmem:[%s331] sm:$0xf]
        %v346 = vld [vmem:[%s331 + $0x4] sm:$0xf]
        %v347 = vld [vmem:[%s331 + $0x8] sm:$0xf]
        %v348 = vld [vmem:[%s331 + $0xc] sm:$0xf]
        %v349 = vld [vmem:[%s331 + $0x10] sm:$0xf]
        %v350 = vld [vmem:[%s331 + $0x14] sm:$0xf]
        %v351 = vld [vmem:[%s331 + $0x18] sm:$0xf]
        %v352 = vld [vmem:[%s331 + $0x1c] sm:$0xf]
        %v353 = vld [vmem:[%s331 + $0x20] sm:$0xf]
        %v354 = vld [vmem:[%s331 + $0x24] sm:$0xf]
        %v355 = vld [vmem:[%s331 + $0x28] sm:$0xf]
        %v356 = vld [vmem:[%s331 + $0x2c] sm:$0xf]
        %v357 = vld [vmem:[%s331 + $0x30] sm:$0xf]
        %v358 = vld [vmem:[%s331 + $0x34] sm:$0xf]
        %v359 = vld [vmem:[%s331 + $0x38] sm:$0xf]
        %v360 = vld [vmem:[%s331 + $0x3c] sm:$0xf]
        %v361 = vld [vmem:[%s2] sm:$0xf]
        %v362 = vld [vmem:[%s341] sm:$0xf]
        %v363 = vld [vmem:[%s341 + $0x4] sm:$0xf]
        %v364 = vld [vmem:[%s341 + $0x8] sm:$0xf]
        %v365 = vld [vmem:[%s341 + $0xc] sm:$0xf]
        %v366 = vld [vmem:[%s341 + $0x10] sm:$0xf]
        %v367 = vld [vmem:[%s341 + $0x14] sm:$0xf]
        %v368 = vld [vmem:[%s341 + $0x18] sm:$0xf]
        %v369 = vld [vmem:[%s341 + $0x1c] sm:$0xf]
        %v370 = vld [vmem:[%s341 + $0x20] sm:$0xf]
        %v371 = vld [vmem:[%s341 + $0x24] sm:$0xf]
        %v372 = vld [vmem:[%s341 + $0x28] sm:$0xf]
        %v373 = vld [vmem:[%s341 + $0x2c] sm:$0xf]
        %v374 = vld [vmem:[%s341 + $0x30] sm:$0xf]
        %v375 = vld [vmem:[%s341 + $0x34] sm:$0xf]
        %v376 = vld [vmem:[%s341 + $0x38] sm:$0xf]
        %v377 = vld [vmem:[%s341 + $0x3c] sm:$0xf]
        %v378 = vld [vmem:[%s3] sm:$0xf]
        %v379 = vld [vmem:[%s3 + $0x4] sm:$0x7]
        %v396 = vunpack.c.l.b16 %v362
        %v397 = vunpack.c.l.b16 %v363
        %v398 = vunpack.c.l.b16 %v364
        %v399 = vunpack.c.l.b16 %v365
        %v400 = vunpack.c.l.b16 %v366
        %v401 = vunpack.c.l.b16 %v367
        %v402 = vunpack.c.l.b16 %v368
        %v403 = vunpack.c.l.b16 %v369
        %v404 = vunpack.c.l.b16 %v370
        %v405 = vunpack.c.l.b16 %v371
        %v406 = vunpack.c.l.b16 %v372
        %v407 = vunpack.c.l.b16 %v373
        %v408 = vunpack.c.l.b16 %v374
        %v409 = vunpack.c.l.b16 %v375
        %v410 = vunpack.c.l.b16 %v376
        %v411 = vunpack.c.l.b16 %v377
        %v412 = vpack.c.b16 %v397, %v396
        %v413 = vpack.c.b16 %v399, %v398
        %v414 = vpack.c.b16 %v401, %v400
        %v415 = vpack.c.b16 %v403, %v402
        %v416 = vpack.c.b16 %v405, %v404
        %v417 = vpack.c.b16 %v407, %v406
        %v418 = vpack.c.b16 %v409, %v408
        %v419 = vpack.c.b16 %v411, %v410
        %v422 = vunpack.c.l.b16 %v378
        %v423 = vunpack.c.l.b16 %v379
        %v424 = vpack.c.b16 %v423, %v422
        %vm425 = vcmask 105472
        %v427 = vsel %vm425, %v412, 0
        %v430 = vsel %vm425, %v413, 0
        %v433 = vsel %vm425, %v414, 0
        %v436 = vsel %vm425, %v415, 0
        %v439 = vsel %vm425, %v416, 0
        %v442 = vsel %vm425, %v417, 0
        %v445 = vsel %vm425, %v418, 0
        %v448 = vsel %vm425, %v419, 0
        %vm450 = vcmask 1045504
        %vm451 = vcmask 1046528
        %v452 = vsel %vm450, 4294967295, 65535
        %v453 = vsel %vm451, %v452, 0
        %v455 = vand.u32 %v424, %v453
        %457 = vmatprep.subr.bf16.mxu0 0
        %458 = vmatpush1.bf16.msra.mxu0 %v455
        %459 = vmatprep.subr.bf16.mxu0 0
        %460 = vmatpush1.bf16.msra.mxu0 0
        %461 = vmatprep.subr.bf16.mxu0 0
        %462 = vmatpush1.bf16.msra.mxu0 0
        %463 = vmatprep.subr.bf16.mxu0 0
        %464 = vmatpush1.bf16.msra.mxu0 0
        %465 = vmatprep.subr.bf16.mxu0 0
        %466 = vmatpush1.bf16.msra.mxu0 0
        %467 = vmatprep.subr.bf16.mxu0 0
        %468 = vmatpush1.bf16.msra.mxu0 0
        %469 = vmatprep.subr.bf16.mxu0 0
        %470 = vmatpush1.bf16.msra.mxu0 0
        %471 = vmatprep.subr.bf16.mxu0 0
        %472 = vmatpush1.bf16.msra.mxu0 0
        %473 = vmatprep.subr.bf16.mxu0 0
        %474 = vmatpush1.bf16.msra.mxu0 0
        %475 = vmatprep.subr.bf16.mxu0 0
        %476 = vmatpush1.bf16.msra.mxu0 0
        %477 = vmatprep.subr.bf16.mxu0 0
        %478 = vmatpush1.bf16.msra.mxu0 0
        %479 = vmatprep.subr.bf16.mxu0 0
        %480 = vmatpush1.bf16.msra.mxu0 0
        %481 = vmatprep.subr.bf16.mxu0 0
        %482 = vmatpush1.bf16.msra.mxu0 0
        %483 = vmatprep.subr.bf16.mxu0 0
        %484 = vmatpush1.bf16.msra.mxu0 0
        %485 = vmatprep.subr.bf16.mxu0 0
        %486 = vmatpush1.bf16.msra.mxu0 0
        %487 = vmatprep.subr.bf16.mxu0 0
        %488 = vmatpush1.bf16.msra.mxu0 0
        %489 = vmatprep.mubr.bf16.mxu0 0
        %490 = vmatmul.mubr.bf16.gmra.mrb[0].mxu0 %v427
        %v491 = vpop.f32.mrb[0].mxu0
        %v492 = vadd.f32 0.0, %v491
        %v493 = vpop.f32.mrb[0].mxu0
        %v494 = vpop.f32.mrb[0].mxu0
        %v495 = vadd.f32 0.0, %v494
        %v496 = vpop.f32.mrb[0].mxu0
        %497 = vmatprep.mubr.bf16.mxu0 0
        %498 = vmatmul.mubr.bf16.gmra.mrb[0].mxu0 %v430
        %v499 = vpop.f32.mrb[0].mxu0
        %v500 = vadd.f32 0.0, %v499
        %v501 = vpop.f32.mrb[0].mxu0
        %v502 = vpop.f32.mrb[0].mxu0
        %v503 = vadd.f32 0.0, %v502
        %v504 = vpop.f32.mrb[0].mxu0
        %505 = vmatprep.mubr.bf16.mxu0 0
        %506 = vmatmul.mubr.bf16.gmra.mrb[0].mxu0 %v433
        %v507 = vpop.f32.mrb[0].mxu0
        %v508 = vadd.f32 0.0, %v507
        %v509 = vpop.f32.mrb[0].mxu0
        %v510 = vpop.f32.mrb[0].mxu0
        %v511 = vadd.f32 0.0, %v510
        %v512 = vpop.f32.mrb[0].mxu0
        %513 = vmatprep.mubr.bf16.mxu0 0
        %514 = vmatmul.mubr.bf16.gmra.mrb[0].mxu0 %v436
        %v515 = vpop.f32.mrb[0].mxu0
        %v516 = vadd.f32 0.0, %v515
        %v517 = vpop.f32.mrb[0].mxu0
        %v518 = vpop.f32.mrb[0].mxu0
        %v519 = vadd.f32 0.0, %v518
        %v520 = vpop.f32.mrb[0].mxu0
        %521 = vmatprep.mubr.bf16.mxu0 0
        %522 = vmatmul.mubr.bf16.gmra.mrb[0].mxu0 %v439
        %v523 = vpop.f32.mrb[0].mxu0
        %v524 = vadd.f32 0.0, %v523
        %v525 = vpop.f32.mrb[0].mxu0
        %v526 = vpop.f32.mrb[0].mxu0
        %v527 = vadd.f32 0.0, %v526
        %v528 = vpop.f32.mrb[0].mxu0
        %529 = vmatprep.mubr.bf16.mxu0 0
        %530 = vmatmul.mubr.bf16.gmra.mrb[0].mxu0 %v442
        %v531 = vpop.f32.mrb[0].mxu0
        %v532 = vadd.f32 0.0, %v531
        %v533 = vpop.f32.mrb[0].mxu0
        %v534 = vpop.f32.mrb[0].mxu0
        %v535 = vadd.f32 0.0, %v534
        %v536 = vpop.f32.mrb[0].mxu0
        %537 = vmatprep.mubr.bf16.mxu0 0
        %538 = vmatmul.mubr.bf16.gmra.mrb[0].mxu0 %v445
        %v539 = vpop.f32.mrb[0].mxu0
        %v540 = vadd.f32 0.0, %v539
        %v541 = vpop.f32.mrb[0].mxu0
        %v542 = vpop.f32.mrb[0].mxu0
        %v543 = vadd.f32 0.0, %v542
        %v544 = vpop.f32.mrb[0].mxu0
        %545 = vmatprep.mubr.bf16.mxu0 0
        %546 = vmatmul.mubr.bf16.gmra.mrb[0].mxu0 %v448
        %v547 = vpop.f32.mrb[0].mxu0
        %v548 = vadd.f32 0.0, %v547
        %v549 = vpop.f32.mrb[0].mxu0
        %v550 = vpop.f32.mrb[0].mxu0
        %v551 = vadd.f32 0.0, %v550
        %v552 = vpop.f32.mrb[0].mxu0
        %553 = vdwg.mxu0
        %v570 = vunpack.c.l.b16 %v345
        %v571 = vunpack.c.l.b16 %v346
        %v572 = vunpack.c.l.b16 %v347
        %v573 = vunpack.c.l.b16 %v348
        %v574 = vunpack.c.l.b16 %v349
        %v575 = vunpack.c.l.b16 %v350
        %v576 = vunpack.c.l.b16 %v351
        %v577 = vunpack.c.l.b16 %v352
        %v578 = vunpack.c.l.b16 %v353
        %v579 = vunpack.c.l.b16 %v354
        %v580 = vunpack.c.l.b16 %v355
        %v581 = vunpack.c.l.b16 %v356
        %v582 = vunpack.c.l.b16 %v357
        %v583 = vunpack.c.l.b16 %v358
        %v584 = vunpack.c.l.b16 %v359
        %v585 = vunpack.c.l.b16 %v360
        %v586 = vpack.c.b16 %v571, %v570
        %v587 = vpack.c.b16 %v573, %v572
        %v588 = vpack.c.b16 %v575, %v574
        %v589 = vpack.c.b16 %v577, %v576
        %v590 = vpack.c.b16 %v579, %v578
        %v591 = vpack.c.b16 %v581, %v580
        %v592 = vpack.c.b16 %v583, %v582
        %v593 = vpack.c.b16 %v585, %v584
        %vm594 = vcmask 64512
        %v596 = vsel %vm594, %v586, 0
        %v599 = vsel %vm594, %v587, 0
        %v602 = vsel %vm594, %v588, 0
        %v605 = vsel %vm594, %v589, 0
        %v608 = vsel %vm594, %v590, 0
        %v611 = vsel %vm594, %v591, 0
        %v614 = vsel %vm594, %v592, 0
        %v617 = vsel %vm594, %v593, 0
        %vm619 = vcmask 1043456
        %v621 = vsel %vm619, %v361, 0
        %623 = vmatprep.subr.bf16.mxu0 0
        %624 = vmatpush1.bf16.msra.mxu0 %v621
        %625 = vmatprep.subr.bf16.mxu0 0
        %626 = vmatpush1.bf16.msra.mxu0 0
        %627 = vmatprep.subr.bf16.mxu0 0
        %628 = vmatpush1.bf16.msra.mxu0 0
        %629 = vmatprep.subr.bf16.mxu0 0
        %630 = vmatpush1.bf16.msra.mxu0 0
        %631 = vmatprep.subr.bf16.mxu0 0
        %632 = vmatpush1.bf16.msra.mxu0 0
        %633 = vmatprep.subr.bf16.mxu0 0
        %634 = vmatpush1.bf16.msra.mxu0 0
        %635 = vmatprep.subr.bf16.mxu0 0
        %636 = vmatpush1.bf16.msra.mxu0 0
        %637 = vmatprep.subr.bf16.mxu0 0
        %638 = vmatpush1.bf16.msra.mxu0 0
        %639 = vmatprep.subr.bf16.mxu0 0
        %640 = vmatpush1.bf16.msra.mxu0 0
        %641 = vmatprep.subr.bf16.mxu0 0
        %642 = vmatpush1.bf16.msra.mxu0 0
        %643 = vmatprep.subr.bf16.mxu0 0
        %644 = vmatpush1.bf16.msra.mxu0 0
        %645 = vmatprep.subr.bf16.mxu0 0
        %646 = vmatpush1.bf16.msra.mxu0 0
        %647 = vmatprep.subr.bf16.mxu0 0
        %648 = vmatpush1.bf16.msra.mxu0 0
        %649 = vmatprep.subr.bf16.mxu0 0
        %650 = vmatpush1.bf16.msra.mxu0 0
        %651 = vmatprep.subr.bf16.mxu0 0
        %652 = vmatpush1.bf16.msra.mxu0 0
        %653 = vmatprep.subr.bf16.mxu0 0
        %654 = vmatpush1.bf16.msra.mxu0 0
        %655 = vmatprep.mubr.bf16.mxu0 0
        %656 = vmatmul.mubr.bf16.gmra.mrb[0].mxu0 %v596
        %v657 = vpop.f32.mrb[0].mxu0
        %v658 = vadd.f32 %v492, %v657
        %v659 = vpop.f32.mrb[0].mxu0
        %v660 = vpop.f32.mrb[0].mxu0
        %v661 = vadd.f32 %v495, %v660
        %v662 = vpop.f32.mrb[0].mxu0
        %663 = vmatprep.mubr.bf16.mxu0 0
        %664 = vmatmul.mubr.bf16.gmra.mrb[0].mxu0 %v599
        %v665 = vpop.f32.mrb[0].mxu0
        %v666 = vadd.f32 %v500, %v665
        %v667 = vpop.f32.mrb[0].mxu0
        %v668 = vpop.f32.mrb[0].mxu0
        %v669 = vadd.f32 %v503, %v668
        %v670 = vpop.f32.mrb[0].mxu0
        %671 = vmatprep.mubr.bf16.mxu0 0
        %672 = vmatmul.mubr.bf16.gmra.mrb[0].mxu0 %v602
        %v673 = vpop.f32.mrb[0].mxu0
        %v674 = vadd.f32 %v508, %v673
        %v675 = vpop.f32.mrb[0].mxu0
        %v676 = vpop.f32.mrb[0].mxu0
        %v677 = vadd.f32 %v511, %v676
        %v678 = vpop.f32.mrb[0].mxu0
        %679 = vmatprep.mubr.bf16.mxu0 0
        %680 = vmatmul.mubr.bf16.gmra.mrb[0].mxu0 %v605
        %v681 = vpop.f32.mrb[0].mxu0
        %v682 = vadd.f32 %v516, %v681
        %v683 = vpop.f32.mrb[0].mxu0
        %v684 = vpop.f32.mrb[0].mxu0
        %v685 = vadd.f32 %v519, %v684
        %v686 = vpop.f32.mrb[0].mxu0
        %687 = vmatprep.mubr.bf16.mxu0 0
        %688 = vmatmul.mubr.bf16.gmra.mrb[0].mxu0 %v608
        %v689 = vpop.f32.mrb[0].mxu0
        %v690 = vadd.f32 %v524, %v689
        %v691 = vpop.f32.mrb[0].mxu0
        %v692 = vpop.f32.mrb[0].mxu0
        %v693 = vadd.f32 %v527, %v692
        %v694 = vpop.f32.mrb[0].mxu0
        %695 = vmatprep.mubr.bf16.mxu0 0
        %696 = vmatmul.mubr.bf16.gmra.mrb[0].mxu0 %v611
        %v697 = vpop.f32.mrb[0].mxu0
        %v698 = vadd.f32 %v532, %v697
        %v699 = vpop.f32.mrb[0].mxu0
        %v700 = vpop.f32.mrb[0].mxu0
        %v701 = vadd.f32 %v535, %v700
        %v702 = vpop.f32.mrb[0].mxu0
        %703 = vmatprep.mubr.bf16.mxu0 0
        %704 = vmatmul.mubr.bf16.gmra.mrb[0].mxu0 %v614
        %v705 = vpop.f32.mrb[0].mxu0
        %v706 = vadd.f32 %v540, %v705
        %v707 = vpop.f32.mrb[0].mxu0
        %v708 = vpop.f32.mrb[0].mxu0
        %v709 = vadd.f32 %v543, %v708
        %v710 = vpop.f32.mrb[0].mxu0
        %711 = vmatprep.mubr.bf16.mxu0 0
        %712 = vmatmul.mubr.bf16.gmra.mrb[0].mxu0 %v617
        %v713 = vpop.f32.mrb[0].mxu0
        %v714 = vadd.f32 %v548, %v713
        %v715 = vpop.f32.mrb[0].mxu0
        %v716 = vpop.f32.mrb[0].mxu0
        %v717 = vadd.f32 %v551, %v716
        %v718 = vpop.f32.mrb[0].mxu0
        %719 = vdwg.mxu0
        %v720 = vld [vmem:[%s4] sm:$0x1]
        %v722 = vlaneseq
        %v723 = vshrl.u32 %v722, 7
        %v724 = vsub.s32 0, %v723
        %v725 = vrot.slane %v720, %v724
        %v727 = vadd.f32 %v658, %v725
        %v728 = vadd.f32 %v661, %v725
        %v729 = vadd.f32 %v666, %v725
        %v730 = vadd.f32 %v669, %v725
        %v731 = vadd.f32 %v674, %v725
        %v732 = vadd.f32 %v677, %v725
        %v733 = vadd.f32 %v682, %v725
        %v734 = vadd.f32 %v685, %v725
        %v735 = vadd.f32 %v690, %v725
        %v736 = vadd.f32 %v693, %v725
        %v737 = vadd.f32 %v698, %v725
        %v738 = vadd.f32 %v701, %v725
        %v739 = vadd.f32 %v706, %v725
        %v740 = vadd.f32 %v709, %v725
        %v741 = vadd.f32 %v714, %v725
        %v742 = vadd.f32 %v717, %v725
        %v743 = vmax.f32 %v727, 0.0
        %v744 = vmax.f32 %v728, 0.0
        %v745 = vmax.f32 %v729, 0.0
        %v746 = vmax.f32 %v730, 0.0
        %v747 = vmax.f32 %v731, 0.0
        %v748 = vmax.f32 %v732, 0.0
        %v749 = vmax.f32 %v733, 0.0
        %v750 = vmax.f32 %v734, 0.0
        %v751 = vmax.f32 %v735, 0.0
        %v752 = vmax.f32 %v736, 0.0
        %v753 = vmax.f32 %v737, 0.0
        %v754 = vmax.f32 %v738, 0.0
        %v755 = vmax.f32 %v739, 0.0
        %v756 = vmax.f32 %v740, 0.0
        %v757 = vmax.f32 %v741, 0.0
        %v758 = vmax.f32 %v742, 0.0
        %v759 = vpack.c.bf16 %v744, %v743
        %v760 = vpack.c.bf16 %v746, %v745
        %v761 = vpack.c.bf16 %v748, %v747
        %v762 = vpack.c.bf16 %v750, %v749
        %v763 = vpack.c.bf16 %v752, %v751
        %v764 = vpack.c.bf16 %v754, %v753
        %v765 = vpack.c.bf16 %v756, %v755
        %v766 = vpack.c.bf16 %v758, %v757
        %v767 = vld [vmem:[%s5] sm:$0xf]
        %v768 = vld [vmem:[%s5 + $0x4] sm:$0xf]
        %v769 = vld [vmem:[%s5 + $0x8] sm:$0xf]
        %v770 = vld [vmem:[%s5 + $0xc] sm:$0xf]
        %v771 = vld [vmem:[%s5 + $0x10] sm:$0xf]
        %v772 = vld [vmem:[%s5 + $0x14] sm:$0xf]
        %v773 = vld [vmem:[%s5 + $0x18] sm:$0xf]
        %v774 = vld [vmem:[%s5 + $0x1c] sm:$0xf]
        %v775 = vld [vmem:[%s5 + $0x20] sm:$0xf]
        %v776 = vld [vmem:[%s5 + $0x24] sm:$0xf]
        %v777 = vld [vmem:[%s5 + $0x28] sm:$0xf]
        %v778 = vld [vmem:[%s5 + $0x2c] sm:$0xf]
        %v779 = vld [vmem:[%s5 + $0x30] sm:$0xf]
        %v780 = vld [vmem:[%s5 + $0x34] sm:$0xf]
        %v781 = vld [vmem:[%s5 + $0x38] sm:$0xf]
        %v782 = vld [vmem:[%s5 + $0x3c] sm:$0xf]
        %v783 = vld [vmem:[%s6] sm:$0x1]
        %v785 = vlaneseq
        %v786 = vshrl.u32 %v785, 7
        %v787 = vsub.s32 0, %v786
        %v788 = vrot.slane %v783, %v787
        %v806 = vunpack.c.l.b16 %v767
        %v807 = vunpack.c.l.b16 %v768
        %v808 = vunpack.c.l.b16 %v769
        %v809 = vunpack.c.l.b16 %v770
        %v810 = vunpack.c.l.b16 %v771
        %v811 = vunpack.c.l.b16 %v772
        %v812 = vunpack.c.l.b16 %v773
        %v813 = vunpack.c.l.b16 %v774
        %v814 = vunpack.c.l.b16 %v775
        %v815 = vunpack.c.l.b16 %v776
        %v816 = vunpack.c.l.b16 %v777
        %v817 = vunpack.c.l.b16 %v778
        %v818 = vunpack.c.l.b16 %v779
        %v819 = vunpack.c.l.b16 %v780
        %v820 = vunpack.c.l.b16 %v781
        %v821 = vunpack.c.l.b16 %v782
        %v822 = vpack.c.b16 %v807, %v806
        %v823 = vpack.c.b16 %v809, %v808
        %v824 = vpack.c.b16 %v811, %v810
        %v825 = vpack.c.b16 %v813, %v812
        %v826 = vpack.c.b16 %v815, %v814
        %v827 = vpack.c.b16 %v817, %v816
        %v828 = vpack.c.b16 %v819, %v818
        %v829 = vpack.c.b16 %v821, %v820
        %838 = vmatprep.subr.bf16.mxu0 0
        %839 = vmatpush1.bf16.msra.mxu0 %v822
        %840 = vmatprep.subr.bf16.mxu0 0
        %841 = vmatpush1.bf16.msra.mxu0 %v823
        %842 = vmatprep.subr.bf16.mxu0 0
        %843 = vmatpush1.bf16.msra.mxu0 %v824
        %844 = vmatprep.subr.bf16.mxu0 0
        %845 = vmatpush1.bf16.msra.mxu0 %v825
        %846 = vmatprep.subr.bf16.mxu0 0
        %847 = vmatpush1.bf16.msra.mxu0 %v826
        %848 = vmatprep.subr.bf16.mxu0 0
        %849 = vmatpush1.bf16.msra.mxu0 %v827
        %850 = vmatprep.subr.bf16.mxu0 0
        %851 = vmatpush1.bf16.msra.mxu0 %v828
        %852 = vmatprep.subr.bf16.mxu0 0
        %853 = vmatpush1.bf16.msra.mxu0 %v829
        %854 = vmatprep.subr.bf16.mxu0 0
        %855 = vmatpush1.bf16.msra.mxu0 0
        %856 = vmatprep.subr.bf16.mxu0 0
        %857 = vmatpush1.bf16.msra.mxu0 0
        %858 = vmatprep.subr.bf16.mxu0 0
        %859 = vmatpush1.bf16.msra.mxu0 0
        %860 = vmatprep.subr.bf16.mxu0 0
        %861 = vmatpush1.bf16.msra.mxu0 0
        %862 = vmatprep.subr.bf16.mxu0 0
        %863 = vmatpush1.bf16.msra.mxu0 0
        %864 = vmatprep.subr.bf16.mxu0 0
        %865 = vmatpush1.bf16.msra.mxu0 0
        %866 = vmatprep.subr.bf16.mxu0 0
        %867 = vmatpush1.bf16.msra.mxu0 0
        %868 = vmatprep.subr.bf16.mxu0 0
        %869 = vmatpush1.bf16.msra.mxu0 0
        %870 = vmatprep.mubr.bf16.mxu0 0
        %871 = vmatmul.mubr.bf16.gmra.mrb[0].mxu0 %v759
        %v872 = vpop.f32.mrb[0].mxu0
        %v873 = vadd.f32 %v788, %v872
        %v874 = vpop.f32.mrb[0].mxu0
        %v875 = vpop.f32.mrb[0].mxu0
        %v876 = vadd.f32 %v788, %v875
        %v877 = vpop.f32.mrb[0].mxu0
        %878 = vmatprep.mubr.bf16.mxu0 0
        %879 = vmatmul.mubr.bf16.gmra.mrb[0].mxu0 %v760
        %v880 = vpop.f32.mrb[0].mxu0
        %v881 = vadd.f32 %v788, %v880
        %v882 = vpop.f32.mrb[0].mxu0
        %v883 = vpop.f32.mrb[0].mxu0
        %v884 = vadd.f32 %v788, %v883
        %v885 = vpop.f32.mrb[0].mxu0
        %886 = vmatprep.mubr.bf16.mxu0 0
        %887 = vmatmul.mubr.bf16.gmra.mrb[0].mxu0 %v761
        %v888 = vpop.f32.mrb[0].mxu0
        %v889 = vadd.f32 %v788, %v888
        %v890 = vpop.f32.mrb[0].mxu0
        %v891 = vpop.f32.mrb[0].mxu0
        %v892 = vadd.f32 %v788, %v891
        %v893 = vpop.f32.mrb[0].mxu0
        %894 = vmatprep.mubr.bf16.mxu0 0
        %895 = vmatmul.mubr.bf16.gmra.mrb[0].mxu0 %v762
        %v896 = vpop.f32.mrb[0].mxu0
        %v897 = vadd.f32 %v788, %v896
        %v898 = vpop.f32.mrb[0].mxu0
        %v899 = vpop.f32.mrb[0].mxu0
        %v900 = vadd.f32 %v788, %v899
        %v901 = vpop.f32.mrb[0].mxu0
        %902 = vmatprep.mubr.bf16.mxu0 0
        %903 = vmatmul.mubr.bf16.gmra.mrb[0].mxu0 %v763
        %v904 = vpop.f32.mrb[0].mxu0
        %v905 = vadd.f32 %v788, %v904
        %v906 = vpop.f32.mrb[0].mxu0
        %v907 = vpop.f32.mrb[0].mxu0
        %v908 = vadd.f32 %v788, %v907
        %v909 = vpop.f32.mrb[0].mxu0
        %910 = vmatprep.mubr.bf16.mxu0 0
        %911 = vmatmul.mubr.bf16.gmra.mrb[0].mxu0 %v764
        %v912 = vpop.f32.mrb[0].mxu0
        %v913 = vadd.f32 %v788, %v912
        %v914 = vpop.f32.mrb[0].mxu0
        %v915 = vpop.f32.mrb[0].mxu0
        %v916 = vadd.f32 %v788, %v915
        %v917 = vpop.f32.mrb[0].mxu0
        %918 = vmatprep.mubr.bf16.mxu0 0
        %919 = vmatmul.mubr.bf16.gmra.mrb[0].mxu0 %v765
        %v920 = vpop.f32.mrb[0].mxu0
        %v921 = vadd.f32 %v788, %v920
        %v922 = vpop.f32.mrb[0].mxu0
        %v923 = vpop.f32.mrb[0].mxu0
        %v924 = vadd.f32 %v788, %v923
        %v925 = vpop.f32.mrb[0].mxu0
        %926 = vmatprep.mubr.bf16.mxu0 0
        %927 = vmatmul.mubr.bf16.gmra.mrb[0].mxu0 %v766
        %v928 = vpop.f32.mrb[0].mxu0
        %v929 = vadd.f32 %v788, %v928
        %v930 = vpop.f32.mrb[0].mxu0
        %v931 = vpop.f32.mrb[0].mxu0
        %v932 = vadd.f32 %v788, %v931
        %v933 = vpop.f32.mrb[0].mxu0
        %934 = vdwg.mxu0
        %v935 = vmax.f32 %v873, 0.0
        %v936 = vmax.f32 %v876, 0.0
        %v937 = vmax.f32 %v881, 0.0
        %v938 = vmax.f32 %v884, 0.0
        %v939 = vmax.f32 %v889, 0.0
        %v940 = vmax.f32 %v892, 0.0
        %v941 = vmax.f32 %v897, 0.0
        %v942 = vmax.f32 %v900, 0.0
        %v943 = vmax.f32 %v905, 0.0
        %v944 = vmax.f32 %v908, 0.0
        %v945 = vmax.f32 %v913, 0.0
        %v946 = vmax.f32 %v916, 0.0
        %v947 = vmax.f32 %v921, 0.0
        %v948 = vmax.f32 %v924, 0.0
        %v949 = vmax.f32 %v929, 0.0
        %v950 = vmax.f32 %v932, 0.0
        %v951 = vrot.slane %v935, 4
        %v952 = vmax.f32 %v935, %v951
        %v953 = vrot.slane %v952, 2
        %v954 = vmax.f32 %v952, %v953
        %v955 = vrot.slane %v954, 1
        %v956 = vmax.f32 %v954, %v955
        %v957 = vrot.slane %v936, 4
        %v958 = vmax.f32 %v936, %v957
        %v959 = vrot.slane %v958, 2
        %v960 = vmax.f32 %v958, %v959
        %v961 = vrot.slane %v960, 1
        %v962 = vmax.f32 %v960, %v961
        %v963 = vrot.slane %v937, 4
        %v964 = vmax.f32 %v937, %v963
        %v965 = vrot.slane %v964, 2
        %v966 = vmax.f32 %v964, %v965
        %v967 = vrot.slane %v966, 1
        %v968 = vmax.f32 %v966, %v967
        %v969 = vrot.slane %v938, 4
        %v970 = vmax.f32 %v938, %v969
        %v971 = vrot.slane %v970, 2
        %v972 = vmax.f32 %v970, %v971
        %v973 = vrot.slane %v972, 1
        %v974 = vmax.f32 %v972, %v973
        %v975 = vrot.slane %v939, 4
        %v976 = vmax.f32 %v939, %v975
        %v977 = vrot.slane %v976, 2
        %v978 = vmax.f32 %v976, %v977
        %v979 = vrot.slane %v978, 1
        %v980 = vmax.f32 %v978, %v979
        %v981 = vrot.slane %v940, 4
        %v982 = vmax.f32 %v940, %v981
        %v983 = vrot.slane %v982, 2
        %v984 = vmax.f32 %v982, %v983
        %v985 = vrot.slane %v984, 1
        %v986 = vmax.f32 %v984, %v985
        %v987 = vrot.slane %v941, 4
        %v988 = vmax.f32 %v941, %v987
        %v989 = vrot.slane %v988, 2
        %v990 = vmax.f32 %v988, %v989
        %v991 = vrot.slane %v990, 1
        %v992 = vmax.f32 %v990, %v991
        %v993 = vrot.slane %v942, 4
        %v994 = vmax.f32 %v942, %v993
        %v995 = vrot.slane %v994, 2
        %v996 = vmax.f32 %v994, %v995
        %v997 = vrot.slane %v996, 1
        %v998 = vmax.f32 %v996, %v997
        %v999 = vrot.slane %v943, 4
        %v1000 = vmax.f32 %v943, %v999
        %v1001 = vrot.slane %v1000, 2
        %v1002 = vmax.f32 %v1000, %v1001
        %v1003 = vrot.slane %v1002, 1
        %v1004 = vmax.f32 %v1002, %v1003
        %v1005 = vrot.slane %v944, 4
        %v1006 = vmax.f32 %v944, %v1005
        %v1007 = vrot.slane %v1006, 2
        %v1008 = vmax.f32 %v1006, %v1007
        %v1009 = vrot.slane %v1008, 1
        %v1010 = vmax.f32 %v1008, %v1009
        %v1011 = vrot.slane %v945, 4
        %v1012 = vmax.f32 %v945, %v1011
        %v1013 = vrot.slane %v1012, 2
        %v1014 = vmax.f32 %v1012, %v1013
        %v1015 = vrot.slane %v1014, 1
        %v1016 = vmax.f32 %v1014, %v1015
        %v1017 = vrot.slane %v946, 4
        %v1018 = vmax.f32 %v946, %v1017
        %v1019 = vrot.slane %v1018, 2
        %v1020 = vmax.f32 %v1018, %v1019
        %v1021 = vrot.slane %v1020, 1
        %v1022 = vmax.f32 %v1020, %v1021
        %v1023 = vrot.slane %v947, 4
        %v1024 = vmax.f32 %v947, %v1023
        %v1025 = vrot.slane %v1024, 2
        %v1026 = vmax.f32 %v1024, %v1025
        %v1027 = vrot.slane %v1026, 1
        %v1028 = vmax.f32 %v1026, %v1027
        %v1029 = vrot.slane %v948, 4
        %v1030 = vmax.f32 %v948, %v1029
        %v1031 = vrot.slane %v1030, 2
        %v1032 = vmax.f32 %v1030, %v1031
        %v1033 = vrot.slane %v1032, 1
        %v1034 = vmax.f32 %v1032, %v1033
        %v1035 = vrot.slane %v949, 4
        %v1036 = vmax.f32 %v949, %v1035
        %v1037 = vrot.slane %v1036, 2
        %v1038 = vmax.f32 %v1036, %v1037
        %v1039 = vrot.slane %v1038, 1
        %v1040 = vmax.f32 %v1038, %v1039
        %v1041 = vrot.slane %v950, 4
        %v1042 = vmax.f32 %v950, %v1041
        %v1043 = vrot.slane %v1042, 2
        %v1044 = vmax.f32 %v1042, %v1043
        %v1045 = vrot.slane %v1044, 1
        %v1046 = vmax.f32 %v1044, %v1045
        %v1047 = vpack.c.bf16 %v956, %v956
        %v1048 = vpack.c.bf16 %v962, %v962
        %v1049 = vpack.c.bf16 %v968, %v968
        %v1050 = vpack.c.bf16 %v974, %v974
        %v1051 = vpack.c.bf16 %v980, %v980
        %v1052 = vpack.c.bf16 %v986, %v986
        %v1053 = vpack.c.bf16 %v992, %v992
        %v1054 = vpack.c.bf16 %v998, %v998
        %v1055 = vpack.c.bf16 %v1004, %v1004
        %v1056 = vpack.c.bf16 %v1010, %v1010
        %v1057 = vpack.c.bf16 %v1016, %v1016
        %v1058 = vpack.c.bf16 %v1022, %v1022
        %v1059 = vpack.c.bf16 %v1028, %v1028
        %v1060 = vpack.c.bf16 %v1034, %v1034
        %v1061 = vpack.c.bf16 %v1040, %v1040
        %v1062 = vpack.c.bf16 %v1046, %v1046
        %v1079 = vunpack.c.l.b16 %v1047
        %v1080 = vunpack.c.l.b16 %v1048
        %v1081 = vunpack.c.l.b16 %v1049
        %v1082 = vunpack.c.l.b16 %v1050
        %v1083 = vunpack.c.l.b16 %v1051
        %v1084 = vunpack.c.l.b16 %v1052
        %v1085 = vunpack.c.l.b16 %v1053
        %v1086 = vunpack.c.l.b16 %v1054
        %v1087 = vunpack.c.l.b16 %v1055
        %v1088 = vunpack.c.l.b16 %v1056
        %v1089 = vunpack.c.l.b16 %v1057
        %v1090 = vunpack.c.l.b16 %v1058
        %v1091 = vunpack.c.l.b16 %v1059
        %v1092 = vunpack.c.l.b16 %v1060
        %v1093 = vunpack.c.l.b16 %v1061
        %v1094 = vunpack.c.l.b16 %v1062
        %v1095 = vpack.c.b16 %v1079, %v1079
        %v1096 = vpack.c.b16 %v1080, %v1080
        %v1097 = vpack.c.b16 %v1081, %v1081
        %v1098 = vpack.c.b16 %v1082, %v1082
        %v1099 = vpack.c.b16 %v1083, %v1083
        %v1100 = vpack.c.b16 %v1084, %v1084
        %v1101 = vpack.c.b16 %v1085, %v1085
        %v1102 = vpack.c.b16 %v1086, %v1086
        %v1103 = vpack.c.b16 %v1087, %v1087
        %v1104 = vpack.c.b16 %v1088, %v1088
        %v1105 = vpack.c.b16 %v1089, %v1089
        %v1106 = vpack.c.b16 %v1090, %v1090
        %v1107 = vpack.c.b16 %v1091, %v1091
        %v1108 = vpack.c.b16 %v1092, %v1092
        %v1109 = vpack.c.b16 %v1093, %v1093
        %v1110 = vpack.c.b16 %v1094, %v1094
        %v1111 = vunpack.c.l.b16 %v1095
        %v1112 = vunpack.c.l.b16 %v1096
        %v1113 = vunpack.c.l.b16 %v1097
        %v1114 = vunpack.c.l.b16 %v1098
        %v1115 = vunpack.c.l.b16 %v1099
        %v1116 = vunpack.c.l.b16 %v1100
        %v1117 = vunpack.c.l.b16 %v1101
        %v1118 = vunpack.c.l.b16 %v1102
        %v1119 = vunpack.c.l.b16 %v1103
        %v1120 = vunpack.c.l.b16 %v1104
        %v1121 = vunpack.c.l.b16 %v1105
        %v1122 = vunpack.c.l.b16 %v1106
        %v1123 = vunpack.c.l.b16 %v1107
        %v1124 = vunpack.c.l.b16 %v1108
        %v1125 = vunpack.c.l.b16 %v1109
        %v1126 = vunpack.c.l.b16 %v1110
        %vm1127 = vcmask 1041409
        %v1128 = vsel %vm1127, %v1112, %v1111
        %vm1129 = vcmask 1042434
        %v1130 = vsel %vm1129, %v1113, %v1128
        %vm1131 = vcmask 1043459
        %v1132 = vsel %vm1131, %v1114, %v1130
        %vm1133 = vcmask 1044484
        %v1134 = vsel %vm1133, %v1115, %v1132
        %vm1135 = vcmask 1045509
        %v1136 = vsel %vm1135, %v1116, %v1134
        %vm1137 = vcmask 1046534
        %v1138 = vsel %vm1137, %v1117, %v1136
        %vm1139 = vcmask 1047559
        %v1140 = vsel %vm1139, %v1118, %v1138
        %v1141 = vsel %vm1127, %v1120, %v1119
        %v1142 = vsel %vm1129, %v1121, %v1141
        %v1143 = vsel %vm1131, %v1122, %v1142
        %v1144 = vsel %vm1133, %v1123, %v1143
        %v1145 = vsel %vm1135, %v1124, %v1144
        %v1146 = vsel %vm1137, %v1125, %v1145
        %v1147 = vsel %vm1139, %v1126, %v1146
        %v1148 = vpack.c.b16 %v1140, %v1140
        %v1149 = vpack.c.b16 %v1147, %v1147
        %1152 = vst [vmem:[%s322] sm:$0xf] %v1148
        %1153 = vst [vmem:[%s322 + $0x4] sm:$0xf] %v1149
        %s1154 = sand.u32 %s204, 1
        %s1155 = scalar_lea.sflag [#allocation3], %s1154
        %s1156 = sand.u32 %s204, 1
        %s1157 = smul.addr %s1156, 8
        %s1158 = scalar_lea.vmem [#allocation2], %s1157
        // Predicated region
        $region49: #{transition_down_forward.1} parent=47 // pred_check
          %p1159 = pneg %p214
        $region50: #{transition_down_forward.1} parent=47 // pred_check_branch
          %1161 = sbr.rel (%p1159) target = $region52
        $region51: #{transition_down_forward.1} parent=47 // pred_region
          %s1162 = smul.u32 2, %s26
          %s1164 = ssub.s32 128, 128
          %1165 = vsyncadd %s1155, %s1164
          %s1166 = smul.addr %s25, 2
          %s1167 = sadd.s32 %s1162, %s1166
          %s1168 = smul.addr %s1167, 64
          %s1169 = scalar_lea.hbm %s7, %s1168
          %s1170 = sshll.u32 %s1158, 4
          %s1171 = int_to_ptr.vmem [resolvable:$true] %s1170
          %1176 = dma.vmem_to_hbm [thread:$0]  %s1171, 128, %s1169, %s1155, 64, 64, 4
        $region52: #{transition_down_forward.1} parent=47 // pred_fallthru
          _
      $region48: #{transition_down_forward.1} parent=5 // pred_fallthru
        _
      %p1177 = scmp.le.s32.totalorder 2, %s16
      // Predicated region
      $region53: #{transition_down_forward.1} parent=5 // pred_check
        %p1178 = pneg %p1177
      $region54: #{transition_down_forward.1} parent=5 // pred_check_branch
        %1180 = sbr.rel (%p1178) target = $region56
      $region55: #{transition_down_forward.1} parent=5 // pred_region
        %s1181 = ssub.s32 %s16, 2
        // Predicated region
        $region57: #{transition_down_forward.1} parent=55 // pred_check
          %p1182 = pneg %p220
        $region58: #{transition_down_forward.1} parent=55 // pred_check_branch
          %1184 = sbr.rel (%p1182) target = $region60
        $region59: #{transition_down_forward.1} parent=55 // pred_region
          %s1185 = sand.u32 %s205, 1
          %s1186 = scalar_lea.sflag [#allocation3], %s1185
          %s1187 = sand.u32 %s205, 1
          %s1188 = smul.addr %s1187, 8
          %s1189 = scalar_lea.vmem [#allocation2], %s1188
          %1190 = dma.done %s1186, 128
        $region60: #{transition_down_forward.1} parent=55 // pred_fallthru
          _
      $region56: #{transition_down_forward.1} parent=5 // pred_fallthru
        _
    $region6: #{transition_down_forward.1} parent=1 // loop_footer
      %s20 = sadd.s32 1, %s16
    $region7: #{transition_down_forward.1} parent=1 // loop_footer_branch
      %15 = sbr.rel target = $region3
    $region8: #{transition_down_forward.1} parent=1 // loop_exit
      _
    %1191 = vsyncpa [#allocation3], 1
    %s1192 = scalar_lea.sflag [#allocation3], 1
    %1193 = vsyncpa %s1192, 1

</llo_original>
